<compile_context>
chip_gen: v6e
topology: v6e:2x2x1
jax: 0.10.0
libtpu: 0.0.40
codegen_flags: <defaults>
</compile_context>

<pallas_src>
import math
import functools

import jax
import jax.numpy as jnp
from jax import lax
from jax.experimental import pallas as pl
from jax.experimental.pallas import tpu as pltpu


def _compat_kernel(q_ref, a_ref, prev_ref, out_ref, *, tb, n):
    # q_ref    : (TB, N, D)   compute dtype (f32, or bf16 on v6e/v7x)
    # a_ref    : (D, D)       compute dtype, A = W_query @ W_key^T
    # prev_ref : (TB, 2)      int32 flattened prev positions [i*N+j, j*N+i]
    #                         (-1 when prev_exchange is None -> never matches)
    # out_ref  : (TB, N*N)    lane-dense softmax logits
    d = q_ref.shape[2]
    nn = n * n

    x = q_ref[...]                                             # (TB, N, D)
    # compat[b,i,j] = x[b,i] @ A @ x[b,j]^T  -- two MXU pushes, no slicing glue.
    xa = jnp.dot(x.reshape(tb * n, d), a_ref[...],
                 preferred_element_type=jnp.float32)           # (TB*N, D) f32
    xa = xa.reshape(tb, n, d).astype(x.dtype)
    compat = lax.dot_general(
        xa, x,
        dimension_numbers=(((2,), (2,)), ((0,), (0,))),        # contract minor dims
        preferred_element_type=jnp.float32)                    # (TB, N, N) f32

    # Flatten FIRST, then do all masking / softmax lane-dense on (TB, N*N).
    flat = compat.reshape(tb, nn)

    lane = lax.broadcasted_iota(jnp.int32, (1, nn), 1)         # (1, N*N)
    diag = (lane % (n + 1)) == 0                               # flat idx i*(N+1)
    pv = prev_ref[...]                                         # (TB, 2) int32
    mask = diag | (lane == pv[:, 0:1]) | (lane == pv[:, 1:2])  # (TB, N*N)
    flat = jnp.where(mask, -jnp.inf, flat)

    # Softmax over the flattened axis. Exact divide so rows sum to 1 in f32.
    # NOTE: an all -inf row (possible only for N <= 2) yields NaN, matching the
    # PyTorch reference.
    m = jnp.max(flat, axis=-1, keepdims=True)
    e = jnp.exp(flat - m)
    s = jnp.sum(e, axis=-1, keepdims=True)
    out_ref[...] = (e / s).astype(out_ref.dtype)


def _pick_block_b(B, N, D, *, vmem_budget_bytes=24 << 20, prefer_min_steps=2):
    """Largest batch block whose working set fits the (v7x-sized) VMEM budget.

    The output block (TB, N*N) requires TB % 8 == 0 or TB == B. When B >= 16
    prefer at least `prefer_min_steps` grid steps so the "parallel" batch axis
    can shard across v7x's two TensorCores.
    """
    # Rough per-batch-row f32 footprint: double-buffered query in + logits out,
    # XA intermediate, compat/flat/exp intermediates and the int32 mask.
    per_row = 4 * (3 * N * D + 6 * N * N) + 64
    cap = max(1, vmem_budget_bytes // per_row)
    cands = [tb for tb in range(1, B + 1)
             if B % tb == 0 and (tb == B or tb % 8 == 0)]
    fitting = [tb for tb in cands if tb <= cap] or cands
    if B >= 16:
        multi = [tb for tb in fitting if B // tb >= prefer_min_steps]
        if multi:
            return max(multi)
    return max(fitting)


def compatability_forward(query, prev_exchange, w_query, w_key, *,
                          compute_dtype=jnp.float32, block_b=None,
                          out_dtype=jnp.float32):
    """query: (B, N, D), prev_exchange: (B, 2) int or None -> logits (B, N*N)."""
    B, N, D = query.shape
    tb = block_b if block_b is not None else _pick_block_b(B, N, D)
    assert B % tb == 0, "batch block must divide B"

    # A = W_query @ W_key^T computed once in f32; compat = (X @ A) @ X^T.
    A = (w_query.astype(jnp.float32) @ w_key.astype(jnp.float32).T)
    A = A.astype(compute_dtype)                                   # (D, D)
    q_in = query.astype(compute_dtype)

    if prev_exchange is None:
        prev_flat = jnp.full((B, 2), -1, jnp.int32)               # never matches
    else:
        pe = prev_exchange.astype(jnp.int32)
        prev_flat = jnp.stack([pe[:, 0] * N + pe[:, 1],
                               pe[:, 1] * N + pe[:, 0]], axis=1)  # (B, 2)

    kernel = functools.partial(_compat_kernel, tb=tb, n=N)

    # Explicit VMEM budget (v7x: 64 MiB physical, keep well under it).
    per_row = 4 * (3 * N * D + 6 * N * N) + 64
    est = tb * per_row + 2 * D * D * 4 + (1 << 20)
    vmem_limit = int(min(48 << 20, max(16 << 20, 2 * est)))

    # TODO(synk): if the caller only samples/argmaxes over the N*N axis, fuse
    # that consumer here instead of writing the full (B, N*N) f32 tensor to HBM.
    out = pl.pallas_call(
        kernel,
        out_shape=jax.ShapeDtypeStruct((B, N * N), out_dtype),
        grid_spec=pltpu.PrefetchScalarGridSpec(
            num_scalar_prefetch=0,
            grid=(B // tb,),
            in_specs=[
                pl.BlockSpec((tb, N, D), lambda b: (b, 0, 0)),    # query block
                pl.BlockSpec((D, D), lambda b: (0, 0)),           # A = Wq @ Wk^T
                pl.BlockSpec((tb, 2), lambda b: (b, 0)),          # prev flat idx
            ],
            out_specs=pl.BlockSpec((tb, N * N), lambda b: (b, 0)),  # lane-dense
        ),
        compiler_params=pltpu.CompilerParams(
            dimension_semantics=("parallel",),
            vmem_limit_bytes=vmem_limit),
    )(q_in, A, prev_flat)

    return out


def _reference(query, prev_exchange, w_query, w_key):
    B, N, D = query.shape
    Q = jnp.einsum("bnd,dk->bnk", query, w_query)
    K = jnp.einsum("bnd,dk->bnk", query, w_key)
    compat = jnp.einsum("bqk,bnk->bqn", Q, K)
    eye = jnp.eye(N, dtype=bool)[None].repeat(B, axis=0)
    compat = jnp.where(eye, -jnp.inf, compat)
    bidx = jnp.arange(B)
    compat = compat.at[bidx, prev_exchange[:, 0], prev_exchange[:, 1]].set(-jnp.inf)
    compat = compat.at[bidx, prev_exchange[:, 1], prev_exchange[:, 0]].set(-jnp.inf)
    return jax.nn.softmax(compat.reshape(B, -1), axis=-1)


if __name__ == "__main__":
    # module config
    dim_model = 32   # D
    dim_key = 16     # dk
    n_heads = 1

    key = jax.random.PRNGKey(0)
    k_q, k_w1, k_w2, k_prev, k_q2, k_prev2 = jax.random.split(key, 6)

    # deterministic parameter init matching init_params(): U(-stdv, stdv),
    # stdv = 1/sqrt(size(-1)) = 1/sqrt(n_heads*dim_key)
    stdv = 1.0 / math.sqrt(n_heads * dim_key)
    W_query = jax.random.uniform(k_w1, (dim_model, n_heads * dim_key),
                                 jnp.float32, -stdv, stdv)
    W_key = jax.random.uniform(k_w2, (dim_model, n_heads * dim_key),
                               jnp.float32, -stdv, stdv)

    # --- case 1: small shapes matching the module spec (B=2, N=8, D=32) ------
    B, N = 2, 8
    query = jax.random.normal(k_q, (B, N, dim_model), jnp.float32)
    prev_exchange = jax.random.randint(k_prev, (B, 2), 0, N, jnp.int32)
    solution_indexes = None  # unused by the forward pass

    logits = jax.block_until_ready(
        compatability_forward(query, prev_exchange, W_query, W_key))
    ref = _reference(query, prev_exchange, W_query, W_key)
    assert logits.shape == (B, N * N)
    assert jnp.allclose(logits, ref, atol=1e-4, rtol=1e-3), "mismatch vs reference (f32)"
    assert jnp.allclose(jnp.sum(logits, axis=-1), 1.0, atol=1e-4), "rows must sum to 1"

    # --- case 2: multi-block grid (B=16 -> 2 grid steps, tb=8) ---------------
    B2 = 16
    query2 = jax.random.normal(k_q2, (B2, N, dim_model), jnp.float32)
    prev2 = jax.random.randint(k_prev2, (B2, 2), 0, N, jnp.int32)
    logits2 = jax.block_until_ready(
        compatability_forward(query2, prev2, W_query, W_key))
    ref2 = _reference(query2, prev2, W_query, W_key)
    assert logits2.shape == (B2, N * N)
    assert jnp.allclose(logits2, ref2, atol=1e-4, rtol=1e-3), "mismatch vs reference (multi-block)"
    assert jnp.allclose(jnp.sum(logits2, axis=-1), 1.0, atol=1e-4), "rows must sum to 1 (multi-block)"

    # --- case 3: bf16 compute path (v6e/v7x MXU operands, f32 accumulation) --
    logits_bf16 = jax.block_until_ready(
        compatability_forward(query, prev_exchange, W_query, W_key,
                              compute_dtype=jnp.bfloat16))
    assert logits_bf16.shape == (B, N * N)
    assert bool(jnp.all(jnp.isfinite(logits_bf16)))
    assert jnp.allclose(jnp.sum(logits_bf16, axis=-1), 1.0, atol=1e-3)
    assert float(jnp.max(jnp.abs(logits_bf16 - ref))) < 0.15, "bf16 path drifted too far"

    print("KERNEL_OK")
</pallas_src>

<mosaic_0001>
module attributes {stable_mosaic.version = 11 : i64} {
  func.func @_compat_kernel(%arg0: i32, %arg1: memref<2x8x32xf32, #tpu.memory_space<vmem>>, %arg2: memref<32x32xf32, #tpu.memory_space<vmem>>, %arg3: memref<2x2xi32, #tpu.memory_space<vmem>>, %arg4: memref<2x64xf32, #tpu.memory_space<vmem>>) attributes {dimension_semantics = [#tpu.dimension_semantics<parallel>], iteration_bounds = array<i64: 1>, scalar_prefetch = 0 : i64, scratch_operands = 0 : i64, tpu.core_type = #tpu.core_type<tc>, window_params = [{transform_indices = @transform_0, window_bounds = array<i64: 2, 8, 32>}, {pipeline_mode = #tpu.pipeline_mode<synchronous>, transform_indices = @transform_1, window_bounds = array<i64: 32, 32>}, {transform_indices = @transform_2, window_bounds = array<i64: 2, 2>}, {transform_indices = @transform_3, window_bounds = array<i64: 2, 64>}]} {
    %c0 = arith.constant 0 : index
    %c0_0 = arith.constant 0 : index
    %c0_1 = arith.constant 0 : index
    %0 = vector.load %arg1[%c0, %c0_0, %c0_1] : memref<2x8x32xf32, #tpu.memory_space<vmem>>, vector<2x8x32xf32>
    %1 = vector.shape_cast %0 : vector<2x8x32xf32> to vector<16x32xf32>
    %c0_2 = arith.constant 0 : index
    %c0_3 = arith.constant 0 : index
    %2 = vector.load %arg2[%c0_2, %c0_3] : memref<32x32xf32, #tpu.memory_space<vmem>>, vector<32x32xf32>
    %cst = arith.constant dense<0.000000e+00> : vector<16x32xf32>
    %3 = tpu.matmul %1, %2, %cst {dimension_numbers = #tpu.dot_dimension_numbers<[1], [0], [0], [1], [0, 0, 1, 1], [], []>} : vector<16x32xf32>, vector<32x32xf32>, vector<16x32xf32> -> vector<16x32xf32>
    %4 = vector.shape_cast %3 : vector<16x32xf32> to vector<2x8x32xf32>
    %cst_4 = arith.constant dense<0.000000e+00> : vector<2x8x8xf32>
    %5 = tpu.matmul %4, %0, %cst_4 {dimension_numbers = #tpu.dot_dimension_numbers<[2], [2], [1], [1], [0, 0, 0, 1, 1, 1], [0], [0]>} : vector<2x8x32xf32>, vector<2x8x32xf32>, vector<2x8x8xf32> -> vector<2x8x8xf32>
    %6 = vector.shape_cast %5 : vector<2x8x8xf32> to vector<2x64xf32>
    %7 = tpu.iota {dimensions = array<i32: 1>} : vector<1x64xi32>
    %c9_i32 = arith.constant 9 : i32
    %c0_i32 = arith.constant 0 : i32
    %8 = arith.cmpi eq, %c9_i32, %c0_i32 : i32
    %c1_i32 = arith.constant 1 : i32
    %9 = arith.select %8, %c1_i32, %c9_i32 : i32
    %10 = vector.broadcast %9 : i32 to vector<1x64xi32>
    %11 = arith.remsi %7, %10 : vector<1x64xi32>
    %c0_i32_5 = arith.constant 0 : i32
    %12 = vector.broadcast %c0_i32_5 : i32 to vector<1x64xi32>
    %13 = arith.cmpi ne, %11, %12 : vector<1x64xi32>
    %c0_i32_6 = arith.constant 0 : i32
    %14 = vector.broadcast %c0_i32_6 : i32 to vector<1x64xi32>
    %15 = arith.cmpi slt, %11, %14 : vector<1x64xi32>
    %c0_i32_7 = arith.constant 0 : i32
    %16 = arith.cmpi slt, %9, %c0_i32_7 : i32
    %17 = vector.broadcast %16 : i1 to vector<1x64xi1>
    %18 = vector.broadcast %17 : vector<1x64xi1> to vector<1x64xi1>
    %19 = arith.xori %15, %18 : vector<1x64xi1>
    %20 = arith.andi %19, %13 : vector<1x64xi1>
    %21 = vector.broadcast %9 : i32 to vector<1x64xi32>
    %22 = arith.addi %11, %21 : vector<1x64xi32>
    %23 = arith.select %20, %22, %11 : vector<1x64xi1>, vector<1x64xi32>
    %c0_i32_8 = arith.constant 0 : i32
    %24 = vector.broadcast %c0_i32_8 : i32 to vector<1x64xi32>
    %25 = arith.cmpi eq, %23, %24 : vector<1x64xi32>
    %c0_9 = arith.constant 0 : index
    %c0_10 = arith.constant 0 : index
    %26 = vector.load %arg3[%c0_9, %c0_10] : memref<2x2xi32, #tpu.memory_space<vmem>>, vector<2x2xi32>
    %27 = vector.extract_strided_slice %26 {offsets = [0, 0], sizes = [2, 1], strides = [1, 1]} : vector<2x2xi32> to vector<2x1xi32>
    %28 = vector.broadcast %7 : vector<1x64xi32> to vector<2x64xi32>
    %29 = vector.broadcast %27 : vector<2x1xi32> to vector<2x64xi32>
    %30 = arith.cmpi eq, %28, %29 : vector<2x64xi32>
    %31 = vector.broadcast %25 : vector<1x64xi1> to vector<2x64xi1>
    %32 = arith.ori %31, %30 : vector<2x64xi1>
    %33 = vector.extract_strided_slice %26 {offsets = [0, 1], sizes = [2, 1], strides = [1, 1]} : vector<2x2xi32> to vector<2x1xi32>
    %34 = vector.broadcast %7 : vector<1x64xi32> to vector<2x64xi32>
    %35 = vector.broadcast %33 : vector<2x1xi32> to vector<2x64xi32>
    %36 = arith.cmpi eq, %34, %35 : vector<2x64xi32>
    %37 = arith.ori %32, %36 : vector<2x64xi1>
    %cst_11 = arith.constant 0xFF800000 : f32
    %38 = vector.broadcast %cst_11 : f32 to vector<2x64xf32>
    %39 = arith.select %37, %38, %6 : vector<2x64xi1>, vector<2x64xf32>
    %cst_12 = arith.constant dense<0xFF800000> : vector<2xf32>
    %40 = vector.multi_reduction <maximumf>, %39, %cst_12 [1] : vector<2x64xf32> to vector<2xf32>
    %41 = vector.shape_cast %40 : vector<2xf32> to vector<2x1xf32>
    %42 = vector.broadcast %41 : vector<2x1xf32> to vector<2x64xf32>
    %43 = arith.subf %39, %42 : vector<2x64xf32>
    %44 = math.exp %43 : vector<2x64xf32>
    %cst_13 = arith.constant dense<0.000000e+00> : vector<2xf32>
    %45 = vector.multi_reduction <add>, %44, %cst_13 [1] : vector<2x64xf32> to vector<2xf32>
    %46 = vector.shape_cast %45 : vector<2xf32> to vector<2x1xf32>
    %47 = vector.broadcast %46 : vector<2x1xf32> to vector<2x64xf32>
    %48 = arith.divf %44, %47 : vector<2x64xf32>
    %c0_14 = arith.constant 0 : index
    %c0_15 = arith.constant 0 : index
    %49 = vector.load %arg4[%c0_14, %c0_15] : memref<2x64xf32, #tpu.memory_space<vmem>>, vector<2x64xf32>
    tpu.vector_store %arg4[%c0_14, %c0_15], %48 {strides = array<i32>} : memref<2x64xf32, #tpu.memory_space<vmem>>, vector<2x64xf32>,
    return
  }
  func.func @transform_0(%arg0: i32) -> (i32, i32, i32) {
    %c0_i32 = arith.constant 0 : i32
    %c0_i32_0 = arith.constant 0 : i32
    %c0_i32_1 = arith.constant 0 : i32
    return %arg0, %c0_i32, %c0_i32_0 : i32, i32, i32
  }
  func.func @transform_1(%arg0: i32) -> (i32, i32) {
    %c0_i32 = arith.constant 0 : i32
    %c0_i32_0 = arith.constant 0 : i32
    %c0_i32_1 = arith.constant 0 : i32
    return %c0_i32, %c0_i32_0 : i32, i32
  }
  func.func @transform_2(%arg0: i32) -> (i32, i32) {
    %c0_i32 = arith.constant 0 : i32
    %c0_i32_0 = arith.constant 0 : i32
    return %arg0, %c0_i32 : i32, i32
  }
  func.func @transform_3(%arg0: i32) -> (i32, i32) {
    %c0_i32 = arith.constant 0 : i32
    %c0_i32_0 = arith.constant 0 : i32
    return %arg0, %c0_i32 : i32, i32
  }
}

</mosaic_0001>

<llo_original>
// kernel: tpu_custom_call.1
$region0: #{tpu_custom_call.1}
  #allocation0 [shape = 'u32[]', space=smem, size = 0x4, offset = 0x4, fixed_abs, tag = 'smem constant byte address 0x4 - core index']
  #allocation1 [shape = 'u32[144,128]{1,0:T(1,128)}', space=vmem, size = 0x12000, scoped, tag = 'internal scratch']
  %s0 = inlined_call_operand.hbm [shape: f32[2,8,32], index: 0, kind: input, shape index: {}]
  %s1 = inlined_call_operand.hbm [shape: f32[32,32], index: 1, kind: input, shape index: {}]
  %s2 = inlined_call_operand.vmem [shape: s32[2,2], index: 2, kind: input, shape index: {}]
  %s3 = inlined_call_operand.hbm [shape: f32[2,64], index: 3, kind: output, shape index: {}]
  %s4 = sld [smem:[#allocation0]]
  $region30: #{tpu_custom_call.1} parent=0
    _
  %s6 = ssub.s32 1, %s4
  %s7 = scalar_select 0, %s6, %s4
  $region1: #{tpu_custom_call.1} parent=0
    #allocation2 [shape = 'u8[8192]{0}', space=vmem, size = 0x2000, scoped, tag = 'input window, operand 0, single buffered']
    #allocation3 [shape = 's32[1]{0}', space=sflag, size = 0x4, scoped, tag = 'scoped memory for tpu_custom_call.1']
    #allocation4 [shape = 's32[1]{0}', space=sflag, size = 0x4, scoped, tag = 'scoped memory for tpu_custom_call.1']
    #allocation5 [shape = 'u8[16384]{0}', space=vmem, size = 0x4000, scoped, tag = 'input window, operand 1, single buffered']
    #allocation6 [shape = 's32[1]{0}', space=sflag, size = 0x4, scoped, tag = 'scoped memory for tpu_custom_call.1']
    #allocation7 [shape = 'u8[1024]{0}', space=vmem, size = 0x400, scoped, tag = 'output window, operand 0, single buffered']
    %8 = vsyncpa [#allocation3], 0
    %9 = vsyncpa [#allocation6], 0
    %10 = vsyncpa [#allocation4], 0
    // Predicated region
    $region2: #{tpu_custom_call.1} parent=1 // pred_check
      _
    $region3: #{tpu_custom_call.1} parent=1 // pred_check_branch
      %12 = sbr.rel (0) target = $region5
    $region4: #{tpu_custom_call.1} parent=1 // pred_region
      %s14 = ssub.s32 256, 256
      %15 = vsyncadd [#allocation3], %s14
      %s16 = sshll.u32 [#allocation2], 4
      %s17 = int_to_ptr.vmem [resolvable:$true] %s16
      %22 = dma.hbm_to_vmem [thread:$0]  %s0, 256, %s17, [#allocation3], 128, 128, 8
    $region5: #{tpu_custom_call.1} parent=1 // pred_fallthru
      _
    // Predicated region
    $region6: #{tpu_custom_call.1} parent=1 // pred_check
      _
    $region7: #{tpu_custom_call.1} parent=1 // pred_check_branch
      %24 = sbr.rel (0) target = $region9
    $region8: #{tpu_custom_call.1} parent=1 // pred_region
      %s26 = ssub.s32 512, 512
      %27 = vsyncadd [#allocation6], %s26
      %s28 = sshll.u32 [#allocation5], 4
      %s29 = int_to_ptr.vmem [resolvable:$true] %s28
      %34 = dma.hbm_to_vmem [thread:$0]  %s1, 512, %s29, [#allocation6], 128, 128, 8
    $region9: #{tpu_custom_call.1} parent=1 // pred_fallthru
      _
    // Predicated region
    $region10: #{tpu_custom_call.1} parent=1 // pred_check
      _
    $region11: #{tpu_custom_call.1} parent=1 // pred_check_branch
      %36 = sbr.rel (0) target = $region13
    $region12: #{tpu_custom_call.1} parent=1 // pred_region
      _
    $region13: #{tpu_custom_call.1} parent=1 // pred_fallthru
      _
    // Predicated region
    $region14: #{tpu_custom_call.1} parent=1 // pred_check
      _
    $region15: #{tpu_custom_call.1} parent=1 // pred_check_branch
      %38 = sbr.rel (0) target = $region17
    $region16: #{tpu_custom_call.1} parent=1 // pred_region
      %39 = dma.done [#allocation3], 256
    $region17: #{tpu_custom_call.1} parent=1 // pred_fallthru
      _
    // Predicated region
    $region18: #{tpu_custom_call.1} parent=1 // pred_check
      _
    $region19: #{tpu_custom_call.1} parent=1 // pred_check_branch
      %41 = sbr.rel (0) target = $region21
    $region20: #{tpu_custom_call.1} parent=1 // pred_region
      %42 = dma.done [#allocation6], 512
    $region21: #{tpu_custom_call.1} parent=1 // pred_fallthru
      _
    %v43 = vld [vmem:[#allocation2] sm:$0xff]
    %v44 = vld [vmem:[#allocation2 + $0x8] sm:$0xff]
    %v45 = vld [vmem:[#allocation5] sm:$0xff]
    %v46 = vld [vmem:[#allocation5 + $0x8] sm:$0xff]
    %v47 = vld [vmem:[#allocation5 + $0x10] sm:$0xff]
    %v48 = vld [vmem:[#allocation5 + $0x18] sm:$0xff]
    %vm49 = vcmask 261120
    %v51 = vsel %vm49, %v43, 0
    %v54 = vsel %vm49, %v44, 0
    %56 = vmatprep.subr.mxu0 0.0
    %57 = vmatpush1.msra.mxu0 0.0
    %58 = vmatprep.subr.mxu0 0.0
    %59 = vmatpush1.msra.mxu0 0.0
    %60 = vmatprep.subr.mxu0 0.0
    %61 = vmatpush1.msra.mxu0 0.0
    %62 = vmatprep.subr.mxu0 0.0
    %63 = vmatpush1.msra.mxu0 0.0
    %64 = vmatprep.subr.mxu0 0.0
    %65 = vmatpush1.msra.mxu0 0.0
    %66 = vmatprep.subr.mxu0 0.0
    %67 = vmatpush1.msra.mxu0 0.0
    %68 = vmatprep.subr.mxu0 0.0
    %69 = vmatpush1.msra.mxu0 0.0
    %70 = vmatprep.subr.mxu0 0.0
    %71 = vmatpush1.msra.mxu0 0.0
    %72 = vmatprep.subr.mxu0 0.0
    %73 = vmatpush1.msra.mxu0 0.0
    %74 = vmatprep.subr.mxu0 0.0
    %75 = vmatpush1.msra.mxu0 0.0
    %76 = vmatprep.subr.mxu0 0.0
    %77 = vmatpush1.msra.mxu0 0.0
    %78 = vmatprep.subr.mxu0 0.0
    %79 = vmatpush1.msra.mxu0 0.0
    %80 = vmatprep.subr.mxu0 0.0
    %81 = vmatpush1.msra.mxu0 %v48
    %82 = vmatprep.subr.mxu0 0.0
    %83 = vmatpush1.msra.mxu0 %v47
    %84 = vmatprep.subr.mxu0 0.0
    %85 = vmatpush1.msra.mxu0 %v46
    %86 = vmatprep.subr.mxu0 0.0
    %87 = vmatpush1.msra.mxu0 %v45
    %88 = vmatprep.subr.mxu0 0.0
    %89 = vmatpush2.msra.mxu0 0.0
    %90 = vmatprep.subr.mxu0 0.0
    %91 = vmatpush2.msra.mxu0 0.0
    %92 = vmatprep.subr.mxu0 0.0
    %93 = vmatpush2.msra.mxu0 0.0
    %94 = vmatprep.subr.mxu0 0.0
    %95 = vmatpush2.msra.mxu0 0.0
    %96 = vmatprep.subr.mxu0 0.0
    %97 = vmatpush2.msra.mxu0 0.0
    %98 = vmatprep.subr.mxu0 0.0
    %99 = vmatpush2.msra.mxu0 0.0
    %100 = vmatprep.subr.mxu0 0.0
    %101 = vmatpush2.msra.mxu0 0.0
    %102 = vmatprep.subr.mxu0 0.0
    %103 = vmatpush2.msra.mxu0 0.0
    %104 = vmatprep.subr.mxu0 0.0
    %105 = vmatpush2.msra.mxu0 0.0
    %106 = vmatprep.subr.mxu0 0.0
    %107 = vmatpush2.msra.mxu0 0.0
    %108 = vmatprep.subr.mxu0 0.0
    %109 = vmatpush2.msra.mxu0 0.0
    %110 = vmatprep.subr.mxu0 0.0
    %111 = vmatpush2.msra.mxu0 0.0
    %112 = vmatprep.subr.mxu0 0.0
    %113 = vmatpush2.msra.mxu0 0.0
    %114 = vmatprep.subr.mxu0 0.0
    %115 = vmatpush2.msra.mxu0 0.0
    %116 = vmatprep.subr.mxu0 0.0
    %117 = vmatpush2.msra.mxu0 0.0
    %118 = vmatprep.subr.mxu0 0.0
    %119 = vmatpush2.msra.mxu0 0.0
    %120 = vmatprep.mubr.f32.mxu0 0.0
    %121 = vmatmul.mubr.f32.gmra.mxu0 %v51
    %v122 = vpop.f32.mrf.mxu0
    %v123 = vadd.f32 0.0, %v122
    %v124 = vpop.f32.mrf.mxu0
    %125 = vmatprep.mubr.f32.mxu0 0.0
    %126 = vmatmul.mubr.f32.gmra.mxu0 %v54
    %v127 = vpop.f32.mrf.mxu0
    %v128 = vadd.f32 0.0, %v127
    %v129 = vpop.f32.mrf.mxu0
    %130 = vdwg.mxu0
    %v132 = vsel %vm49, %v123, 0
    %134 = vmatprep.subr.mxu0 0.0
    %135 = vmatpush1.xpose.msra.mxu0 0.0
    %136 = vmatprep.subr.mxu0 0.0
    %137 = vmatpush1.xpose.msra.mxu0 0.0
    %138 = vmatprep.subr.mxu0 0.0
    %139 = vmatpush1.xpose.msra.mxu0 0.0
    %140 = vmatprep.subr.mxu0 0.0
    %141 = vmatpush1.xpose.msra.mxu0 0.0
    %142 = vmatprep.subr.mxu0 0.0
    %143 = vmatpush1.xpose.msra.mxu0 0.0
    %144 = vmatprep.subr.mxu0 0.0
    %145 = vmatpush1.xpose.msra.mxu0 0.0
    %146 = vmatprep.subr.mxu0 0.0
    %147 = vmatpush1.xpose.msra.mxu0 0.0
    %148 = vmatprep.subr.mxu0 0.0
    %149 = vmatpush1.xpose.msra.mxu0 0.0
    %150 = vmatprep.subr.mxu0 0.0
    %151 = vmatpush1.xpose.msra.mxu0 0.0
    %152 = vmatprep.subr.mxu0 0.0
    %153 = vmatpush1.xpose.msra.mxu0 0.0
    %154 = vmatprep.subr.mxu0 0.0
    %155 = vmatpush1.xpose.msra.mxu0 0.0
    %156 = vmatprep.subr.mxu0 0.0
    %157 = vmatpush1.xpose.msra.mxu0 0.0
    %158 = vmatprep.subr.mxu0 0.0
    %159 = vmatpush1.xpose.msra.mxu0 0.0
    %160 = vmatprep.subr.mxu0 0.0
    %161 = vmatpush1.xpose.msra.mxu0 0.0
    %162 = vmatprep.subr.mxu0 0.0
    %163 = vmatpush1.xpose.msra.mxu0 0.0
    %164 = vmatprep.subr.mxu0 0.0
    %165 = vmatpush1.xpose.msra.mxu0 %v51
    %166 = vmatprep.subr.mxu0 0.0
    %167 = vmatpush2.xpose.msra.mxu0 0.0
    %168 = vmatprep.subr.mxu0 0.0
    %169 = vmatpush2.xpose.msra.mxu0 0.0
    %170 = vmatprep.subr.mxu0 0.0
    %171 = vmatpush2.xpose.msra.mxu0 0.0
    %172 = vmatprep.subr.mxu0 0.0
    %173 = vmatpush2.xpose.msra.mxu0 0.0
    %174 = vmatprep.subr.mxu0 0.0
    %175 = vmatpush2.xpose.msra.mxu0 0.0
    %176 = vmatprep.subr.mxu0 0.0
    %177 = vmatpush2.xpose.msra.mxu0 0.0
    %178 = vmatprep.subr.mxu0 0.0
    %179 = vmatpush2.xpose.msra.mxu0 0.0
    %180 = vmatprep.subr.mxu0 0.0
    %181 = vmatpush2.xpose.msra.mxu0 0.0
    %182 = vmatprep.subr.mxu0 0.0
    %183 = vmatpush2.xpose.msra.mxu0 0.0
    %184 = vmatprep.subr.mxu0 0.0
    %185 = vmatpush2.xpose.msra.mxu0 0.0
    %186 = vmatprep.subr.mxu0 0.0
    %187 = vmatpush2.xpose.msra.mxu0 0.0
    %188 = vmatprep.subr.mxu0 0.0
    %189 = vmatpush2.xpose.msra.mxu0 0.0
    %190 = vmatprep.subr.mxu0 0.0
    %191 = vmatpush2.xpose.msra.mxu0 0.0
    %192 = vmatprep.subr.mxu0 0.0
    %193 = vmatpush2.xpose.msra.mxu0 0.0
    %194 = vmatprep.subr.mxu0 0.0
    %195 = vmatpush2.xpose.msra.mxu0 0.0
    %196 = vmatprep.subr.mxu0 0.0
    %197 = vmatpush2.xpose.msra.mxu0 0.0
    %198 = vmatprep.mubr.f32.mxu0 0.0
    %199 = vmatmul.mubr.f32.gmra.mxu0 %v132
    %v200 = vpop.f32.mrf.mxu0
    %v201 = vadd.f32 0.0, %v200
    %v202 = vpop.f32.mrf.mxu0
    %203 = vdwg.mxu0
    %v205 = vsel %vm49, %v128, 0
    %207 = vmatprep.subr.mxu0 0.0
    %208 = vmatpush1.xpose.msra.mxu0 0.0
    %209 = vmatprep.subr.mxu0 0.0
    %210 = vmatpush1.xpose.msra.mxu0 0.0
    %211 = vmatprep.subr.mxu0 0.0
    %212 = vmatpush1.xpose.msra.mxu0 0.0
    %213 = vmatprep.subr.mxu0 0.0
    %214 = vmatpush1.xpose.msra.mxu0 0.0
    %215 = vmatprep.subr.mxu0 0.0
    %216 = vmatpush1.xpose.msra.mxu0 0.0
    %217 = vmatprep.subr.mxu0 0.0
    %218 = vmatpush1.xpose.msra.mxu0 0.0
    %219 = vmatprep.subr.mxu0 0.0
    %220 = vmatpush1.xpose.msra.mxu0 0.0
    %221 = vmatprep.subr.mxu0 0.0
    %222 = vmatpush1.xpose.msra.mxu0 0.0
    %223 = vmatprep.subr.mxu0 0.0
    %224 = vmatpush1.xpose.msra.mxu0 0.0
    %225 = vmatprep.subr.mxu0 0.0
    %226 = vmatpush1.xpose.msra.mxu0 0.0
    %227 = vmatprep.subr.mxu0 0.0
    %228 = vmatpush1.xpose.msra.mxu0 0.0
    %229 = vmatprep.subr.mxu0 0.0
    %230 = vmatpush1.xpose.msra.mxu0 0.0
    %231 = vmatprep.subr.mxu0 0.0
    %232 = vmatpush1.xpose.msra.mxu0 0.0
    %233 = vmatprep.subr.mxu0 0.0
    %234 = vmatpush1.xpose.msra.mxu0 0.0
    %235 = vmatprep.subr.mxu0 0.0
    %236 = vmatpush1.xpose.msra.mxu0 0.0
    %237 = vmatprep.subr.mxu0 0.0
    %238 = vmatpush1.xpose.msra.mxu0 %v54
    %239 = vmatprep.subr.mxu0 0.0
    %240 = vmatpush2.xpose.msra.mxu0 0.0
    %241 = vmatprep.subr.mxu0 0.0
    %242 = vmatpush2.xpose.msra.mxu0 0.0
    %243 = vmatprep.subr.mxu0 0.0
    %244 = vmatpush2.xpose.msra.mxu0 0.0
    %245 = vmatprep.subr.mxu0 0.0
    %246 = vmatpush2.xpose.msra.mxu0 0.0
    %247 = vmatprep.subr.mxu0 0.0
    %248 = vmatpush2.xpose.msra.mxu0 0.0
    %249 = vmatprep.subr.mxu0 0.0
    %250 = vmatpush2.xpose.msra.mxu0 0.0
    %251 = vmatprep.subr.mxu0 0.0
    %252 = vmatpush2.xpose.msra.mxu0 0.0
    %253 = vmatprep.subr.mxu0 0.0
    %254 = vmatpush2.xpose.msra.mxu0 0.0
    %255 = vmatprep.subr.mxu0 0.0
    %256 = vmatpush2.xpose.msra.mxu0 0.0
    %257 = vmatprep.subr.mxu0 0.0
    %258 = vmatpush2.xpose.msra.mxu0 0.0
    %259 = vmatprep.subr.mxu0 0.0
    %260 = vmatpush2.xpose.msra.mxu0 0.0
    %261 = vmatprep.subr.mxu0 0.0
    %262 = vmatpush2.xpose.msra.mxu0 0.0
    %263 = vmatprep.subr.mxu0 0.0
    %264 = vmatpush2.xpose.msra.mxu0 0.0
    %265 = vmatprep.subr.mxu0 0.0
    %266 = vmatpush2.xpose.msra.mxu0 0.0
    %267 = vmatprep.subr.mxu0 0.0
    %268 = vmatpush2.xpose.msra.mxu0 0.0
    %269 = vmatprep.subr.mxu0 0.0
    %270 = vmatpush2.xpose.msra.mxu0 0.0
    %271 = vmatprep.mubr.f32.mxu0 0.0
    %272 = vmatmul.mubr.f32.gmra.mxu0 %v205
    %v273 = vpop.f32.mrf.mxu0
    %v274 = vadd.f32 0.0, %v273
    %v275 = vpop.f32.mrf.mxu0
    %276 = vdwg.mxu0
    %v277 = vcombine.high %v201, 0.0
    %v279 = vunpack.c.l.s4 1983009808
    %v280 = vunpack.c.0.s8 %v279
    %v281 = vlaneseq
    %v282 = vshrl.u32 %v281, 7
    %v283 = vsub.s32 %v280, %v282
    %v284 = vrot.slane %v201, %v283
    %v286 = vunpack.c.l.s4 1983009808
    %v287 = vunpack.c.0.s8 %v286
    %v288 = vlaneseq
    %v289 = vshrl.u32 %v288, 7
    %v290 = vsub.s32 %v287, %v289
    %v291 = vrot.slane %v277, %v290
    %v292 = vcombine.high %v274, 0.0
    %v294 = vunpack.c.l.s4 1983009808
    %v295 = vunpack.c.0.s8 %v294
    %v296 = vlaneseq
    %v297 = vshrl.u32 %v296, 7
    %v298 = vsub.s32 %v295, %v297
    %v299 = vrot.slane %v274, %v298
    %v301 = vunpack.c.l.s4 1983009808
    %v302 = vunpack.c.0.s8 %v301
    %v303 = vlaneseq
    %v304 = vshrl.u32 %v303, 7
    %v305 = vsub.s32 %v302, %v304
    %v306 = vrot.slane %v292, %v305
    %v307 = vcombine.low %v284, %v299
    %v308 = vcombine.high %v284, %v299
    %v310 = vunpack.c.l.s4 1934713408
    %v311 = vunpack.c.0.s8 %v310
    %v312 = vlaneseq
    %v313 = vshrl.u32 %v312, 7
    %v314 = vsub.s32 %v311, %v313
    %v315 = vrot.slane %v307, %v314
    %v317 = vunpack.c.l.s4 1934713408
    %v318 = vunpack.c.0.s8 %v317
    %v319 = vlaneseq
    %v320 = vshrl.u32 %v319, 7
    %v321 = vsub.s32 %v318, %v320
    %v322 = vrot.slane %v308, %v321
    %v323 = vcombine.low %v291, %v306
    %v324 = vcombine.high %v291, %v306
    %v326 = vunpack.c.l.s4 1934713408
    %v327 = vunpack.c.0.s8 %v326
    %v328 = vlaneseq
    %v329 = vshrl.u32 %v328, 7
    %v330 = vsub.s32 %v327, %v329
    %v331 = vrot.slane %v323, %v330
    %v333 = vunpack.c.l.s4 1934713408
    %v334 = vunpack.c.0.s8 %v333
    %v335 = vlaneseq
    %v336 = vshrl.u32 %v335, 7
    %v337 = vsub.s32 %v334, %v336
    %v338 = vrot.slane %v324, %v337
    %v339 = vcombine.high %v315, 0.0
    %v340 = vcombine.high %v322, 0.0
    %v341 = vcombine.high %v331, 0.0
    %v342 = vcombine.high %v338, 0.0
    %344 = vrot.lane.b32.xlu0 %v339, 8
    %v345 = vpop.permute.xlu0 %344
    %348 = vrot.lane.b32.xlu0 %v322, 16
    %v349 = vpop.permute.xlu0 %348
    %352 = vrot.lane.b32.xlu0 %v340, 24
    %v353 = vpop.permute.xlu0 %352
    %356 = vrot.lane.b32.xlu0 %v331, 32
    %v357 = vpop.permute.xlu0 %356
    %360 = vrot.lane.b32.xlu0 %v341, 40
    %v361 = vpop.permute.xlu0 %360
    %364 = vrot.lane.b32.xlu0 %v338, 48
    %v365 = vpop.permute.xlu0 %364
    %368 = vrot.lane.b32.xlu0 %v342, 56
    %v369 = vpop.permute.xlu0 %368
    %vm371 = vcmask 64512
    %v372 = vsel %vm371, %v315, %v345
    %vm373 = vcmask 130048
    %v374 = vsel %vm373, %v372, %v349
    %vm375 = vcmask 195584
    %v376 = vsel %vm375, %v374, %v353
    %v377 = vsel %vm49, %v376, %v357
    %vm378 = vcmask 326656
    %v379 = vsel %vm378, %v377, %v361
    %vm380 = vcmask 392192
    %v381 = vsel %vm380, %v379, %v365
    %vm382 = vcmask 457728
    %v383 = vsel %vm382, %v381, %v369
    %v384 = vlaneseq
    %v385 = vand.u32 %v384, 127
    %vm386 = vcmp.lt.s32.totalorder %v385, 0
    %v387 = vsub.s32 0, %v385
    %v388 = vsel %vm386, %v387, %v385
    %v389 = vmul.u32.u64.compose %v388, 3817748708
    %v390 = vextract.low.u32 %v389
    %v391 = vextract.high.u32 %v389
    %v392 = vshrl.u32 %v391, 3
    %v393 = vmul.u32 %v392, 9
    %v394 = vsub.s32 %v388, %v393
    %v395 = vsub.s32 0, %v394
    %v396 = vsel %vm386, %v395, %v394
    %vm397 = vcmp.ne.s32.totalorder %v396, 0
    %vm398 = vcmp.lt.s32.totalorder %v396, 0
    %vm399 = vmand %vm398, %vm397
    %v400 = vadd.s32 %v396, 9
    %v401 = vsel %vm399, %v400, %v396
    %vm402 = vcmp.eq.s32.totalorder %v401, 0
    %v403 = vld [vmem:[%s2] sm:$0x3]
    %404 = vset.pattern.permute.xlu0 0
    %405 = vperm.xlu0 %404, %v403
    %v406 = vpop.permute.xlu0 %405
    %vm407 = vcmp.eq.s32.totalorder %v385, %v406
    %v408 = vsel %vm402, 1, 0
    %vm409 = vcmp.eq.s32.totalorder %v408, 1
    %vm410 = vmor %vm409, %vm407
    %411 = vset.pattern.permute.xlu0 1
    %412 = vperm.xlu0 %411, %v403
    %v413 = vpop.permute.xlu0 %412
    %vm414 = vcmp.eq.s32.totalorder %v385, %v413
    %vm415 = vmor %vm410, %vm414
    %v416 = vsel %vm415, -inf, %v383
    %vm417 = vcmask 517120
    %v418 = vsel %vm417, %v416, -inf
    %419 = vmax.xlane.f32.xlu0 %v418
    %v420 = vpop.xlane.xlu0 %419
    %v421 = vsub.f32 %v416, %v420
    %v422 = vmul.f32 %v421, 1.442695
    %v423 = vpow.pop %v422
    %v424 = vsel %vm417, %v423, 0.0
    %425 = vadd.xlane.f32.xlu0 %v424
    %v426 = vpop.xlane.xlu0 %425
    %v427 = vrcp.pop %v426
    %v428 = vmul.f32 %v423, %v427
    %429 = vst.msk [vmem:[#allocation7] sm:$0x3] %vm417, %v428
    // Predicated region
    $region22: #{tpu_custom_call.1} parent=1 // pred_check
      _
    $region23: #{tpu_custom_call.1} parent=1 // pred_check_branch
      %431 = sbr.rel (0) target = $region25
    $region24: #{tpu_custom_call.1} parent=1 // pred_region
      %s433 = ssub.s32 32, 32
      %434 = vsyncadd [#allocation4], %s433
      %s436 = sshll.u32 [#allocation7], 4
      %s437 = int_to_ptr.vmem [resolvable:$true] %s436
      %439 = dma.vmem_to_hbm [thread:$0]  %s437, 32, %s3, [#allocation4]
    $region25: #{tpu_custom_call.1} parent=1 // pred_fallthru
      _
    // Predicated region
    $region26: #{tpu_custom_call.1} parent=1 // pred_check
      _
    $region27: #{tpu_custom_call.1} parent=1 // pred_check_branch
      %441 = sbr.rel (0) target = $region29
    $region28: #{tpu_custom_call.1} parent=1 // pred_region
      %442 = dma.done [#allocation4], 32
    $region29: #{tpu_custom_call.1} parent=1 // pred_fallthru
      _
    %443 = vsyncpa [#allocation3], 1
    %444 = vsyncpa [#allocation6], 1
    %445 = vsyncpa [#allocation4], 1

</llo_original>
